<compile_context>
chip_gen: v6e
topology: v6e:2x2x1
jax: 0.10.0
libtpu: 0.0.40
codegen_flags: <defaults>
</compile_context>

<pallas_src>
import jax
import jax.numpy as jnp
from jax.experimental import pallas as pl
from jax.experimental.pallas import tpu as pltpu

_LANE = 128
_SUBLANE = 8
_NEG_BIG = -1e30  # fills padded logit lanes so exp(pad) == 0 in the softmax


def _round_up(n, m):
    return ((n + m - 1) // m) * m


def herg_mlp_kernel(x_ref, w1_ref, b1_ref, w2_ref, b2_ref, w3_ref, b3_ref, o_ref):
    """One batch tile of the full MLP: 3 MXU matmuls + ReLU + lane-axis softmax.

    x_ref : (TB, IN_P)  bf16   batch tile
    wN    : (K_P, N_P)  bf16   VMEM-resident across all grid steps
    bN    : (1, N_P)    f32    (b3 padded lanes hold -1e30)
    o_ref : (TB, OUT_P) f32    lane-dense (OUT_P = 128); real classes sliced outside
    """
    x = x_ref[...]

    # linear1 + ReLU (f32 accumulate, bf16 for the next MXU pass)
    h1 = jnp.dot(x, w1_ref[...], preferred_element_type=jnp.float32) + b1_ref[...]
    h1 = jnp.maximum(h1, 0.0).astype(jnp.bfloat16)

    # linear2 + ReLU
    h2 = jnp.dot(h1, w2_ref[...], preferred_element_type=jnp.float32) + b2_ref[...]
    h2 = jnp.maximum(h2, 0.0).astype(jnp.bfloat16)

    # linear3 + softmax over the feature (lane) axis; padded lanes contribute exp()=0.
    logits = jnp.dot(h2, w3_ref[...], preferred_element_type=jnp.float32) + b3_ref[...]
    m = jnp.max(logits, axis=-1, keepdims=True)
    e = jnp.exp(logits - m)
    s = jnp.sum(e, axis=-1, keepdims=True)
    o_ref[...] = e * pl.reciprocal(s, approx=False)


def herg_classifier_forward(x, kernel_params, output_size, *, block_batch=512):
    """Batch-tiled pallas_call over padded/bf16 kernel params."""
    w1, b1, w2, b2, w3, b3 = kernel_params
    batch, in_dim = x.shape
    in_p, h1_p = w1.shape
    h2_p = w2.shape[1]
    out_p = w3.shape[1]

    # Pad feature dim to the padded weight K and cast to bf16 for the MXU.
    if in_dim != in_p:
        x = jnp.pad(x, ((0, 0), (0, in_p - in_dim)))
    x = x.astype(jnp.bfloat16)

    # Batch tile: multiple of 8 sublanes; zero-pad batch rows up to a tile multiple.
    tb = min(block_batch, _round_up(batch, _SUBLANE))
    padded_batch = _round_up(batch, tb)
    if padded_batch != batch:
        x = jnp.pad(x, ((0, padded_batch - batch), (0, 0)))
    grid = (padded_batch // tb,)

    def resident(shape):
        # Constant block index -> stays VMEM-resident across batch tiles (no re-DMA).
        return pl.BlockSpec(shape, lambda i: (0, 0))

    flops = 2 * padded_batch * (in_p * h1_p + h1_p * h2_p + h2_p * out_p)
    bytes_accessed = int(
        x.size * 2                                   # bf16 activations in
        + (w1.size + w2.size + w3.size) * 2          # bf16 weights (loaded once)
        + (b1.size + b2.size + b3.size) * 4          # f32 biases
        + padded_batch * out_p * 4                   # f32 probs out
    )

    out = pl.pallas_call(
        herg_mlp_kernel,
        out_shape=jax.ShapeDtypeStruct((padded_batch, out_p), jnp.float32),
        grid_spec=pltpu.PrefetchScalarGridSpec(
            num_scalar_prefetch=0,
            grid=grid,
            in_specs=[
                pl.BlockSpec((tb, in_p), lambda i: (i, 0)),
                resident(w1.shape), resident(b1.shape),
                resident(w2.shape), resident(b2.shape),
                resident(w3.shape), resident(b3.shape),
            ],
            out_specs=pl.BlockSpec((tb, out_p), lambda i: (i, 0)),
        ),
        compiler_params=pltpu.CompilerParams(
            dimension_semantics=("parallel",),
        ),
        cost_estimate=pl.CostEstimate(
            flops=flops,
            transcendentals=padded_batch * out_p,
            bytes_accessed=bytes_accessed,
        ),
    )(x, w1, b1, w2, b2, w3, b3)

    # Drop batch padding and padded logit lanes.
    return out[:batch, :output_size]


def init_params(key, input_size, output_size):
    """Logical (unpadded) f32 params, kaiming-normal-like, stored as (in, out)."""
    k1, k2, k3, kb1, kb2, kb3 = jax.random.split(key, 6)

    def kaiming(k, fan_in, fan_out):
        std = (2.0 / fan_in) ** 0.5
        return std * jax.random.normal(k, (fan_in, fan_out), dtype=jnp.float32)

    def bias(k, fan_in, fan_out):
        bound = 1.0 / (fan_in ** 0.5)
        return jax.random.uniform(
            k, (1, fan_out), minval=-bound, maxval=bound, dtype=jnp.float32
        )

    w1 = kaiming(k1, input_size, 400)
    b1 = bias(kb1, input_size, 400)
    w2 = kaiming(k2, 400, 200)
    b2 = bias(kb2, 400, 200)
    w3 = kaiming(k3, 200, output_size)
    b3 = bias(kb3, 200, output_size)
    return (w1, b1, w2, b2, w3, b3)


def pad_params_for_kernel(params, input_size, output_size):
    """Zero-pad all dims to lane multiples; bf16 weights, f32 biases.

    Padded rows of w2/w3 are zero so padded hidden lanes contribute nothing;
    padded lanes of b3 are -1e30 so the softmax ignores the padded logits exactly.
    """
    w1, b1, w2, b2, w3, b3 = params
    in_p = _round_up(input_size, _LANE)
    h1_p = _round_up(w1.shape[1], _LANE)
    h2_p = _round_up(w2.shape[1], _LANE)
    out_p = _round_up(output_size, _LANE)

    def pad_w(w, kp, np_):
        return jnp.pad(
            w, ((0, kp - w.shape[0]), (0, np_ - w.shape[1]))
        ).astype(jnp.bfloat16)

    def pad_b(b, np_, fill=0.0):
        return jnp.pad(
            b, ((0, 0), (0, np_ - b.shape[1])), constant_values=fill
        ).astype(jnp.float32)

    w1p, b1p = pad_w(w1, in_p, h1_p), pad_b(b1, h1_p)
    w2p, b2p = pad_w(w2, h1_p, h2_p), pad_b(b2, h2_p)
    w3p, b3p = pad_w(w3, h2_p, out_p), pad_b(b3, out_p, fill=_NEG_BIG)
    return (w1p, b1p, w2p, b2p, w3p, b3p)


def reference_forward(x, params):
    """Pure-JAX reference mirroring the kernel's bf16-weight / f32-accumulate math."""
    w1, b1, w2, b2, w3, b3 = params
    xb = x.astype(jnp.bfloat16)
    h1 = jnp.maximum(
        jnp.dot(xb, w1.astype(jnp.bfloat16), preferred_element_type=jnp.float32) + b1, 0.0
    )
    h2 = jnp.maximum(
        jnp.dot(h1.astype(jnp.bfloat16), w2.astype(jnp.bfloat16),
                preferred_element_type=jnp.float32) + b2, 0.0
    )
    logits = jnp.dot(h2.astype(jnp.bfloat16), w3.astype(jnp.bfloat16),
                     preferred_element_type=jnp.float32) + b3
    return jax.nn.softmax(logits, axis=1)


if __name__ == "__main__":
    key = jax.random.PRNGKey(0)
    kx, kp = jax.random.split(key)

    batch = 8
    input_size = 256   # fingerprint length (synthetic)
    output_size = 2    # binary hERG blocker classification

    x = jax.random.normal(kx, (batch, input_size), dtype=jnp.float32)
    params = init_params(kp, input_size, output_size)
    kernel_params = pad_params_for_kernel(params, input_size, output_size)

    out = herg_classifier_forward(x, kernel_params, output_size)
    out = jax.block_until_ready(out)

    ref = reference_forward(x, params)
    assert out.shape == (batch, output_size)
    # softmax rows sum to 1 (padded lanes contribute exactly 0)
    assert jnp.allclose(jnp.sum(out, axis=1), 1.0, atol=1e-5)
    # bf16 weights in both kernel and reference -> tight agreement expected
    assert jnp.allclose(out, ref, atol=2e-3, rtol=2e-3), "mismatch vs reference"

    print("KERNEL_OK")
</pallas_src>

<mosaic_0001>
module attributes {stable_mosaic.version = 11 : i64} {
  func.func @herg_mlp_kernel(%arg0: i32, %arg1: memref<8x256xbf16, #tpu.memory_space<vmem>>, %arg2: memref<256x512xbf16, #tpu.memory_space<vmem>>, %arg3: memref<1x512xf32, #tpu.memory_space<vmem>>, %arg4: memref<512x256xbf16, #tpu.memory_space<vmem>>, %arg5: memref<1x256xf32, #tpu.memory_space<vmem>>, %arg6: memref<256x128xbf16, #tpu.memory_space<vmem>>, %arg7: memref<1x128xf32, #tpu.memory_space<vmem>>, %arg8: memref<8x128xf32, #tpu.memory_space<vmem>>) attributes {dimension_semantics = [#tpu.dimension_semantics<parallel>], iteration_bounds = array<i64: 1>, scalar_prefetch = 0 : i64, scratch_operands = 0 : i64, tpu.core_type = #tpu.core_type<tc>, window_params = [{transform_indices = @transform_0, window_bounds = array<i64: 8, 256>}, {pipeline_mode = #tpu.pipeline_mode<synchronous>, transform_indices = @transform_1, window_bounds = array<i64: 256, 512>}, {pipeline_mode = #tpu.pipeline_mode<synchronous>, transform_indices = @transform_2, window_bounds = array<i64: 1, 512>}, {pipeline_mode = #tpu.pipeline_mode<synchronous>, transform_indices = @transform_3, window_bounds = array<i64: 512, 256>}, {pipeline_mode = #tpu.pipeline_mode<synchronous>, transform_indices = @transform_4, window_bounds = array<i64: 1, 256>}, {pipeline_mode = #tpu.pipeline_mode<synchronous>, transform_indices = @transform_5, window_bounds = array<i64: 256, 128>}, {pipeline_mode = #tpu.pipeline_mode<synchronous>, transform_indices = @transform_6, window_bounds = array<i64: 1, 128>}, {transform_indices = @transform_7, window_bounds = array<i64: 8, 128>}]} {
    %c0 = arith.constant 0 : index
    %c0_0 = arith.constant 0 : index
    %0 = vector.load %arg1[%c0, %c0_0] : memref<8x256xbf16, #tpu.memory_space<vmem>>, vector<8x256xbf16>
    %c0_1 = arith.constant 0 : index
    %c0_2 = arith.constant 0 : index
    %1 = vector.load %arg2[%c0_1, %c0_2] : memref<256x512xbf16, #tpu.memory_space<vmem>>, vector<256x512xbf16>
    %cst = arith.constant dense<0.000000e+00> : vector<8x512xf32>
    %2 = tpu.matmul %0, %1, %cst {dimension_numbers = #tpu.dot_dimension_numbers<[1], [0], [0], [1], [0, 0, 1, 1], [], []>} : vector<8x256xbf16>, vector<256x512xbf16>, vector<8x512xf32> -> vector<8x512xf32>
    %c0_3 = arith.constant 0 : index
    %c0_4 = arith.constant 0 : index
    %3 = vector.load %arg3[%c0_3, %c0_4] : memref<1x512xf32, #tpu.memory_space<vmem>>, vector<1x512xf32>
    %4 = vector.broadcast %3 : vector<1x512xf32> to vector<8x512xf32>
    %5 = arith.addf %2, %4 : vector<8x512xf32>
    %cst_5 = arith.constant 0.000000e+00 : f32
    %6 = vector.broadcast %cst_5 : f32 to vector<8x512xf32>
    %7 = arith.maximumf %5, %6 : vector<8x512xf32>
    %8 = arith.truncf %7 : vector<8x512xf32> to vector<8x512xbf16>
    %c0_6 = arith.constant 0 : index
    %c0_7 = arith.constant 0 : index
    %9 = vector.load %arg4[%c0_6, %c0_7] : memref<512x256xbf16, #tpu.memory_space<vmem>>, vector<512x256xbf16>
    %cst_8 = arith.constant dense<0.000000e+00> : vector<8x256xf32>
    %10 = tpu.matmul %8, %9, %cst_8 {dimension_numbers = #tpu.dot_dimension_numbers<[1], [0], [0], [1], [0, 0, 1, 1], [], []>} : vector<8x512xbf16>, vector<512x256xbf16>, vector<8x256xf32> -> vector<8x256xf32>
    %c0_9 = arith.constant 0 : index
    %c0_10 = arith.constant 0 : index
    %11 = vector.load %arg5[%c0_9, %c0_10] : memref<1x256xf32, #tpu.memory_space<vmem>>, vector<1x256xf32>
    %12 = vector.broadcast %11 : vector<1x256xf32> to vector<8x256xf32>
    %13 = arith.addf %10, %12 : vector<8x256xf32>
    %cst_11 = arith.constant 0.000000e+00 : f32
    %14 = vector.broadcast %cst_11 : f32 to vector<8x256xf32>
    %15 = arith.maximumf %13, %14 : vector<8x256xf32>
    %16 = arith.truncf %15 : vector<8x256xf32> to vector<8x256xbf16>
    %c0_12 = arith.constant 0 : index
    %c0_13 = arith.constant 0 : index
    %17 = vector.load %arg6[%c0_12, %c0_13] : memref<256x128xbf16, #tpu.memory_space<vmem>>, vector<256x128xbf16>
    %cst_14 = arith.constant dense<0.000000e+00> : vector<8x128xf32>
    %18 = tpu.matmul %16, %17, %cst_14 {dimension_numbers = #tpu.dot_dimension_numbers<[1], [0], [0], [1], [0, 0, 1, 1], [], []>} : vector<8x256xbf16>, vector<256x128xbf16>, vector<8x128xf32> -> vector<8x128xf32>
    %c0_15 = arith.constant 0 : index
    %c0_16 = arith.constant 0 : index
    %19 = vector.load %arg7[%c0_15, %c0_16] : memref<1x128xf32, #tpu.memory_space<vmem>>, vector<1x128xf32>
    %20 = vector.broadcast %19 : vector<1x128xf32> to vector<8x128xf32>
    %21 = arith.addf %18, %20 : vector<8x128xf32>
    %cst_17 = arith.constant dense<0xFF800000> : vector<8xf32>
    %22 = vector.multi_reduction <maximumf>, %21, %cst_17 [1] : vector<8x128xf32> to vector<8xf32>
    %23 = vector.shape_cast %22 : vector<8xf32> to vector<8x1xf32>
    %24 = vector.broadcast %23 : vector<8x1xf32> to vector<8x128xf32>
    %25 = arith.subf %21, %24 : vector<8x128xf32>
    %26 = math.exp %25 : vector<8x128xf32>
    %cst_18 = arith.constant dense<0.000000e+00> : vector<8xf32>
    %27 = vector.multi_reduction <add>, %26, %cst_18 [1] : vector<8x128xf32> to vector<8xf32>
    %28 = vector.shape_cast %27 : vector<8xf32> to vector<8x1xf32>
    %29 = tpu.reciprocal %28 : vector<8x1xf32> -> vector<8x1xf32>
    %30 = vector.broadcast %29 : vector<8x1xf32> to vector<8x128xf32>
    %31 = arith.mulf %26, %30 : vector<8x128xf32>
    %c0_19 = arith.constant 0 : index
    %c0_20 = arith.constant 0 : index
    %32 = vector.load %arg8[%c0_19, %c0_20] : memref<8x128xf32, #tpu.memory_space<vmem>>, vector<8x128xf32>
    tpu.vector_store %arg8[%c0_19, %c0_20], %31 {strides = array<i32>} : memref<8x128xf32, #tpu.memory_space<vmem>>, vector<8x128xf32>,
    return
  }
  func.func @transform_0(%arg0: i32) -> (i32, i32) {
    %c0_i32 = arith.constant 0 : i32
    %c0_i32_0 = arith.constant 0 : i32
    return %arg0, %c0_i32 : i32, i32
  }
  func.func @transform_1(%arg0: i32) -> (i32, i32) {
    %c0_i32 = arith.constant 0 : i32
    %c0_i32_0 = arith.constant 0 : i32
    %c0_i32_1 = arith.constant 0 : i32
    return %c0_i32, %c0_i32_0 : i32, i32
  }
  func.func @transform_2(%arg0: i32) -> (i32, i32) {
    %c0_i32 = arith.constant 0 : i32
    %c0_i32_0 = arith.constant 0 : i32
    %c0_i32_1 = arith.constant 0 : i32
    return %c0_i32, %c0_i32_0 : i32, i32
  }
  func.func @transform_3(%arg0: i32) -> (i32, i32) {
    %c0_i32 = arith.constant 0 : i32
    %c0_i32_0 = arith.constant 0 : i32
    %c0_i32_1 = arith.constant 0 : i32
    return %c0_i32, %c0_i32_0 : i32, i32
  }
  func.func @transform_4(%arg0: i32) -> (i32, i32) {
    %c0_i32 = arith.constant 0 : i32
    %c0_i32_0 = arith.constant 0 : i32
    %c0_i32_1 = arith.constant 0 : i32
    return %c0_i32, %c0_i32_0 : i32, i32
  }
  func.func @transform_5(%arg0: i32) -> (i32, i32) {
    %c0_i32 = arith.constant 0 : i32
    %c0_i32_0 = arith.constant 0 : i32
    %c0_i32_1 = arith.constant 0 : i32
    return %c0_i32, %c0_i32_0 : i32, i32
  }
  func.func @transform_6(%arg0: i32) -> (i32, i32) {
    %c0_i32 = arith.constant 0 : i32
    %c0_i32_0 = arith.constant 0 : i32
    %c0_i32_1 = arith.constant 0 : i32
    return %c0_i32, %c0_i32_0 : i32, i32
  }
  func.func @transform_7(%arg0: i32) -> (i32, i32) {
    %c0_i32 = arith.constant 0 : i32
    %c0_i32_0 = arith.constant 0 : i32
    return %arg0, %c0_i32 : i32, i32
  }
}

</mosaic_0001>

<llo_original>
// kernel: tpu_custom_call.1
$region0: #{tpu_custom_call.1}
  #allocation0 [shape = 'u32[]', space=smem, size = 0x4, offset = 0x4, fixed_abs, tag = 'smem constant byte address 0x4 - core index']
  #allocation1 [shape = 'u32[144,128]{1,0:T(1,128)}', space=vmem, size = 0x12000, scoped, tag = 'internal scratch']
  %s0 = inlined_call_operand.hbm [shape: bf16[8,256], index: 0, kind: input, shape index: {}]
  %s1 = inlined_call_operand.hbm [shape: bf16[256,512], index: 1, kind: input, shape index: {}]
  %s2 = inlined_call_operand.hbm [shape: f32[1,512], index: 2, kind: input, shape index: {}]
  %s3 = inlined_call_operand.hbm [shape: bf16[512,256], index: 3, kind: input, shape index: {}]
  %s4 = inlined_call_operand.vmem [shape: f32[1,256], index: 4, kind: input, shape index: {}]
  %s5 = inlined_call_operand.hbm [shape: bf16[256,128], index: 5, kind: input, shape index: {}]
  %s6 = inlined_call_operand.vmem [shape: f32[1,128], index: 6, kind: input, shape index: {}]
  %s7 = inlined_call_operand.hbm [shape: f32[8,128], index: 7, kind: output, shape index: {}]
  %s8 = sld [smem:[#allocation0]]
  $region58: #{tpu_custom_call.1} parent=0
    _
  %s10 = ssub.s32 1, %s8
  %s11 = scalar_select 0, %s10, %s8
  $region1: #{tpu_custom_call.1} parent=0
    #allocation2 [shape = 'u8[4096]{0}', space=vmem, size = 0x1000, scoped, tag = 'input window, operand 0, single buffered']
    #allocation3 [shape = 's32[1]{0}', space=sflag, size = 0x4, scoped, tag = 'scoped memory for tpu_custom_call.1']
    #allocation4 [shape = 's32[1]{0}', space=sflag, size = 0x4, scoped, tag = 'scoped memory for tpu_custom_call.1']
    #allocation5 [shape = 'u8[262144]{0}', space=vmem, size = 0x40000, scoped, tag = 'input window, operand 1, single buffered']
    #allocation6 [shape = 's32[1]{0}', space=sflag, size = 0x4, scoped, tag = 'scoped memory for tpu_custom_call.1']
    #allocation7 [shape = 'u8[2048]{0}', space=vmem, size = 0x800, scoped, tag = 'input window, operand 2, single buffered']
    #allocation8 [shape = 'u8[262144]{0}', space=vmem, size = 0x40000, scoped, tag = 'input window, operand 3, single buffered']
    #allocation9 [shape = 's32[1]{0}', space=sflag, size = 0x4, scoped, tag = 'scoped memory for tpu_custom_call.1']
    #allocation10 [shape = 'u8[65536]{0}', space=vmem, size = 0x10000, scoped, tag = 'input window, operand 5, single buffered']
    #allocation11 [shape = 'u8[4096]{0}', space=vmem, size = 0x1000, scoped, tag = 'output window, operand 0, single buffered']
    %12 = vsyncpa [#allocation3], 0
    %13 = vsyncpa [#allocation6], 0
    %14 = vsyncpa [#allocation9], 0
    %15 = vsyncpa [#allocation4], 0
    // Predicated region
    $region2: #{tpu_custom_call.1} parent=1 // pred_check
      _
    $region3: #{tpu_custom_call.1} parent=1 // pred_check_branch
      %17 = sbr.rel (0) target = $region5
    $region4: #{tpu_custom_call.1} parent=1 // pred_region
      %s19 = ssub.s32 128, 128
      %20 = vsyncadd [#allocation3], %s19
      %s22 = sshll.u32 [#allocation2], 4
      %s23 = int_to_ptr.vmem [resolvable:$true] %s22
      %25 = dma.hbm_to_vmem [thread:$0]  %s0, 128, %s23, [#allocation3]
    $region5: #{tpu_custom_call.1} parent=1 // pred_fallthru
      _
    // Predicated region
    $region6: #{tpu_custom_call.1} parent=1 // pred_check
      _
    $region7: #{tpu_custom_call.1} parent=1 // pred_check_branch
      %27 = sbr.rel (0) target = $region9
    $region8: #{tpu_custom_call.1} parent=1 // pred_region
      %s29 = ssub.s32 8192, 8192
      %30 = vsyncadd [#allocation6], %s29
      %s31 = sshll.u32 [#allocation5], 4
      %s32 = int_to_ptr.vmem [resolvable:$true] %s31
      %37 = dma.hbm_to_vmem [thread:$0]  %s1, 8192, %s32, [#allocation6], 256, 256, 16
    $region9: #{tpu_custom_call.1} parent=1 // pred_fallthru
      _
    // Predicated region
    $region10: #{tpu_custom_call.1} parent=1 // pred_check
      _
    $region11: #{tpu_custom_call.1} parent=1 // pred_check_branch
      %39 = sbr.rel (0) target = $region13
    $region12: #{tpu_custom_call.1} parent=1 // pred_region
      %s41 = ssub.s32 64, 64
      %42 = vsyncadd [#allocation6], %s41
      %s44 = sshll.u32 [#allocation7], 4
      %s45 = int_to_ptr.vmem [resolvable:$true] %s44
      %47 = dma.hbm_to_vmem [thread:$0]  %s2, 64, %s45, [#allocation6]
    $region13: #{tpu_custom_call.1} parent=1 // pred_fallthru
      _
    // Predicated region
    $region14: #{tpu_custom_call.1} parent=1 // pred_check
      _
    $region15: #{tpu_custom_call.1} parent=1 // pred_check_branch
      %49 = sbr.rel (0) target = $region17
    $region16: #{tpu_custom_call.1} parent=1 // pred_region
      %s51 = ssub.s32 8192, 8192
      %52 = vsyncadd [#allocation9], %s51
      %s53 = sshll.u32 [#allocation8], 4
      %s54 = int_to_ptr.vmem [resolvable:$true] %s53
      %59 = dma.hbm_to_vmem [thread:$0]  %s3, 8192, %s54, [#allocation9], 128, 128, 8
    $region17: #{tpu_custom_call.1} parent=1 // pred_fallthru
      _
    // Predicated region
    $region18: #{tpu_custom_call.1} parent=1 // pred_check
      _
    $region19: #{tpu_custom_call.1} parent=1 // pred_check_branch
      %61 = sbr.rel (0) target = $region21
    $region20: #{tpu_custom_call.1} parent=1 // pred_region
      _
    $region21: #{tpu_custom_call.1} parent=1 // pred_fallthru
      _
    // Predicated region
    $region22: #{tpu_custom_call.1} parent=1 // pred_check
      _
    $region23: #{tpu_custom_call.1} parent=1 // pred_check_branch
      %63 = sbr.rel (0) target = $region25
    $region24: #{tpu_custom_call.1} parent=1 // pred_region
      %s65 = ssub.s32 2048, 2048
      %66 = vsyncadd [#allocation9], %s65
      %s67 = sshll.u32 [#allocation10], 4
      %s68 = int_to_ptr.vmem [resolvable:$true] %s67
      %73 = dma.hbm_to_vmem [thread:$0]  %s5, 2048, %s68, [#allocation9], 64, 64, 4
    $region25: #{tpu_custom_call.1} parent=1 // pred_fallthru
      _
    // Predicated region
    $region26: #{tpu_custom_call.1} parent=1 // pred_check
      _
    $region27: #{tpu_custom_call.1} parent=1 // pred_check_branch
      %75 = sbr.rel (0) target = $region29
    $region28: #{tpu_custom_call.1} parent=1 // pred_region
      _
    $region29: #{tpu_custom_call.1} parent=1 // pred_fallthru
      _
    // Predicated region
    $region30: #{tpu_custom_call.1} parent=1 // pred_check
      _
    $region31: #{tpu_custom_call.1} parent=1 // pred_check_branch
      %77 = sbr.rel (0) target = $region33
    $region32: #{tpu_custom_call.1} parent=1 // pred_region
      %78 = dma.done [#allocation3], 128
    $region33: #{tpu_custom_call.1} parent=1 // pred_fallthru
      _
    // Predicated region
    $region34: #{tpu_custom_call.1} parent=1 // pred_check
      _
    $region35: #{tpu_custom_call.1} parent=1 // pred_check_branch
      %80 = sbr.rel (0) target = $region37
    $region36: #{tpu_custom_call.1} parent=1 // pred_region
      %81 = dma.done [#allocation6], 8192
    $region37: #{tpu_custom_call.1} parent=1 // pred_fallthru
      _
    // Predicated region
    $region38: #{tpu_custom_call.1} parent=1 // pred_check
      _
    $region39: #{tpu_custom_call.1} parent=1 // pred_check_branch
      %83 = sbr.rel (0) target = $region41
    $region40: #{tpu_custom_call.1} parent=1 // pred_region
      %84 = dma.done [#allocation6], 64
    $region41: #{tpu_custom_call.1} parent=1 // pred_fallthru
      _
    // Predicated region
    $region42: #{tpu_custom_call.1} parent=1 // pred_check
      _
    $region43: #{tpu_custom_call.1} parent=1 // pred_check_branch
      %86 = sbr.rel (0) target = $region45
    $region44: #{tpu_custom_call.1} parent=1 // pred_region
      %87 = dma.done [#allocation9], 8192
    $region45: #{tpu_custom_call.1} parent=1 // pred_fallthru
      _
    // Predicated region
    $region46: #{tpu_custom_call.1} parent=1 // pred_check
      _
    $region47: #{tpu_custom_call.1} parent=1 // pred_check_branch
      %89 = sbr.rel (0) target = $region49
    $region48: #{tpu_custom_call.1} parent=1 // pred_region
      %90 = dma.done [#allocation9], 2048
    $region49: #{tpu_custom_call.1} parent=1 // pred_fallthru
      _
    %v92 = vld [vmem:[#allocation2] sm:$0xff]
    %v93 = vld [vmem:[#allocation5] sm:$0xff]
    %v94 = vld [vmem:[#allocation5 + $0x8] sm:$0xff]
    %v95 = vld [vmem:[#allocation5 + $0x10] sm:$0xff]
    %v96 = vld [vmem:[#allocation5 + $0x18] sm:$0xff]
    %v97 = vld [vmem:[#allocation5 + $0x20] sm:$0xff]
    %v98 = vld [vmem:[#allocation5 + $0x28] sm:$0xff]
    %v99 = vld [vmem:[#allocation5 + $0x30] sm:$0xff]
    %v100 = vld [vmem:[#allocation5 + $0x38] sm:$0xff]
    %v101 = vld [vmem:[#allocation5 + $0x40] sm:$0xff]
    %v102 = vld [vmem:[#allocation5 + $0x48] sm:$0xff]
    %v103 = vld [vmem:[#allocation5 + $0x50] sm:$0xff]
    %v104 = vld [vmem:[#allocation5 + $0x58] sm:$0xff]
    %v105 = vld [vmem:[#allocation5 + $0x60] sm:$0xff]
    %v106 = vld [vmem:[#allocation5 + $0x68] sm:$0xff]
    %v107 = vld [vmem:[#allocation5 + $0x70] sm:$0xff]
    %v108 = vld [vmem:[#allocation5 + $0x78] sm:$0xff]
    %v109 = vld [vmem:[#allocation5 + $0x80] sm:$0xff]
    %v110 = vld [vmem:[#allocation5 + $0x88] sm:$0xff]
    %v111 = vld [vmem:[#allocation5 + $0x90] sm:$0xff]
    %v112 = vld [vmem:[#allocation5 + $0x98] sm:$0xff]
    %v113 = vld [vmem:[#allocation5 + $0xa0] sm:$0xff]
    %v114 = vld [vmem:[#allocation5 + $0xa8] sm:$0xff]
    %v115 = vld [vmem:[#allocation5 + $0xb0] sm:$0xff]
    %v116 = vld [vmem:[#allocation5 + $0xb8] sm:$0xff]
    %v117 = vld [vmem:[#allocation5 + $0xc0] sm:$0xff]
    %v118 = vld [vmem:[#allocation5 + $0xc8] sm:$0xff]
    %v119 = vld [vmem:[#allocation5 + $0xd0] sm:$0xff]
    %v120 = vld [vmem:[#allocation5 + $0xd8] sm:$0xff]
    %v121 = vld [vmem:[#allocation5 + $0xe0] sm:$0xff]
    %v122 = vld [vmem:[#allocation5 + $0xe8] sm:$0xff]
    %v123 = vld [vmem:[#allocation5 + $0xf0] sm:$0xff]
    %v124 = vld [vmem:[#allocation5 + $0xf8] sm:$0xff]
    %v125 = vld [vmem:[#allocation5 + $0x100] sm:$0xff]
    %v126 = vld [vmem:[#allocation5 + $0x108] sm:$0xff]
    %v127 = vld [vmem:[#allocation5 + $0x110] sm:$0xff]
    %v128 = vld [vmem:[#allocation5 + $0x118] sm:$0xff]
    %v129 = vld [vmem:[#allocation5 + $0x120] sm:$0xff]
    %v130 = vld [vmem:[#allocation5 + $0x128] sm:$0xff]
    %v131 = vld [vmem:[#allocation5 + $0x130] sm:$0xff]
    %v132 = vld [vmem:[#allocation5 + $0x138] sm:$0xff]
    %v133 = vld [vmem:[#allocation5 + $0x140] sm:$0xff]
    %v134 = vld [vmem:[#allocation5 + $0x148] sm:$0xff]
    %v135 = vld [vmem:[#allocation5 + $0x150] sm:$0xff]
    %v136 = vld [vmem:[#allocation5 + $0x158] sm:$0xff]
    %v137 = vld [vmem:[#allocation5 + $0x160] sm:$0xff]
    %v138 = vld [vmem:[#allocation5 + $0x168] sm:$0xff]
    %v139 = vld [vmem:[#allocation5 + $0x170] sm:$0xff]
    %v140 = vld [vmem:[#allocation5 + $0x178] sm:$0xff]
    %v141 = vld [vmem:[#allocation5 + $0x180] sm:$0xff]
    %v142 = vld [vmem:[#allocation5 + $0x188] sm:$0xff]
    %v143 = vld [vmem:[#allocation5 + $0x190] sm:$0xff]
    %v144 = vld [vmem:[#allocation5 + $0x198] sm:$0xff]
    %v145 = vld [vmem:[#allocation5 + $0x1a0] sm:$0xff]
    %v146 = vld [vmem:[#allocation5 + $0x1a8] sm:$0xff]
    %v147 = vld [vmem:[#allocation5 + $0x1b0] sm:$0xff]
    %v148 = vld [vmem:[#allocation5 + $0x1b8] sm:$0xff]
    %v149 = vld [vmem:[#allocation5 + $0x1c0] sm:$0xff]
    %v150 = vld [vmem:[#allocation5 + $0x1c8] sm:$0xff]
    %v151 = vld [vmem:[#allocation5 + $0x1d0] sm:$0xff]
    %v152 = vld [vmem:[#allocation5 + $0x1d8] sm:$0xff]
    %v153 = vld [vmem:[#allocation5 + $0x1e0] sm:$0xff]
    %v154 = vld [vmem:[#allocation5 + $0x1e8] sm:$0xff]
    %v155 = vld [vmem:[#allocation5 + $0x1f0] sm:$0xff]
    %v156 = vld [vmem:[#allocation5 + $0x1f8] sm:$0xff]
    %v157 = vld [vmem:[#allocation7] sm:$0xf]
    %v159 = vlaneseq
    %v160 = vshrl.u32 %v159, 7
    %v161 = vsub.s32 0, %v160
    %v162 = vrot.slane %v157, %v161
    %v163 = vlaneseq
    %v164 = vshrl.u32 %v163, 7
    %v165 = vsub.s32 1, %v164
    %v166 = vrot.slane %v157, %v165
    %v167 = vlaneseq
    %v168 = vshrl.u32 %v167, 7
    %v169 = vsub.s32 2, %v168
    %v170 = vrot.slane %v157, %v169
    %v171 = vlaneseq
    %v172 = vshrl.u32 %v171, 7
    %v173 = vsub.s32 3, %v172
    %v174 = vrot.slane %v157, %v173
    %v180 = vunpack.c.l.b16 %v92
    %v181 = vunpack.c.h.b16 %v92
    %v182 = vpack.c.b16 %v180, %v180
    %v183 = vpack.c.b16 %v181, %v181
    %v250 = vunpack.c.l.b16 %v93
    %v251 = vunpack.c.h.b16 %v93
    %v252 = vunpack.c.l.b16 %v94
    %v253 = vunpack.c.h.b16 %v94
    %v254 = vunpack.c.l.b16 %v95
    %v255 = vunpack.c.h.b16 %v95
    %v256 = vunpack.c.l.b16 %v96
    %v257 = vunpack.c.h.b16 %v96
    %v258 = vunpack.c.l.b16 %v97
    %v259 = vunpack.c.h.b16 %v97
    %v260 = vunpack.c.l.b16 %v98
    %v261 = vunpack.c.h.b16 %v98
    %v262 = vunpack.c.l.b16 %v99
    %v263 = vunpack.c.h.b16 %v99
    %v264 = vunpack.c.l.b16 %v100
    %v265 = vunpack.c.h.b16 %v100
    %v266 = vunpack.c.l.b16 %v101
    %v267 = vunpack.c.h.b16 %v101
    %v268 = vunpack.c.l.b16 %v102
    %v269 = vunpack.c.h.b16 %v102
    %v270 = vunpack.c.l.b16 %v103
    %v271 = vunpack.c.h.b16 %v103
    %v272 = vunpack.c.l.b16 %v104
    %v273 = vunpack.c.h.b16 %v104
    %v274 = vunpack.c.l.b16 %v105
    %v275 = vunpack.c.h.b16 %v105
    %v276 = vunpack.c.l.b16 %v106
    %v277 = vunpack.c.h.b16 %v106
    %v278 = vunpack.c.l.b16 %v107
    %v279 = vunpack.c.h.b16 %v107
    %v280 = vunpack.c.l.b16 %v108
    %v281 = vunpack.c.h.b16 %v108
    %v282 = vunpack.c.l.b16 %v109
    %v283 = vunpack.c.h.b16 %v109
    %v284 = vunpack.c.l.b16 %v110
    %v285 = vunpack.c.h.b16 %v110
    %v286 = vunpack.c.l.b16 %v111
    %v287 = vunpack.c.h.b16 %v111
    %v288 = vunpack.c.l.b16 %v112
    %v289 = vunpack.c.h.b16 %v112
    %v290 = vunpack.c.l.b16 %v113
    %v291 = vunpack.c.h.b16 %v113
    %v292 = vunpack.c.l.b16 %v114
    %v293 = vunpack.c.h.b16 %v114
    %v294 = vunpack.c.l.b16 %v115
    %v295 = vunpack.c.h.b16 %v115
    %v296 = vunpack.c.l.b16 %v116
    %v297 = vunpack.c.h.b16 %v116
    %v298 = vunpack.c.l.b16 %v117
    %v299 = vunpack.c.h.b16 %v117
    %v300 = vunpack.c.l.b16 %v118
    %v301 = vunpack.c.h.b16 %v118
    %v302 = vunpack.c.l.b16 %v119
    %v303 = vunpack.c.h.b16 %v119
    %v304 = vunpack.c.l.b16 %v120
    %v305 = vunpack.c.h.b16 %v120
    %v306 = vunpack.c.l.b16 %v121
    %v307 = vunpack.c.h.b16 %v121
    %v308 = vunpack.c.l.b16 %v122
    %v309 = vunpack.c.h.b16 %v122
    %v310 = vunpack.c.l.b16 %v123
    %v311 = vunpack.c.h.b16 %v123
    %v312 = vunpack.c.l.b16 %v124
    %v313 = vunpack.c.h.b16 %v124
    %v314 = vunpack.c.l.b16 %v125
    %v315 = vunpack.c.h.b16 %v125
    %v316 = vunpack.c.l.b16 %v126
    %v317 = vunpack.c.h.b16 %v126
    %v318 = vunpack.c.l.b16 %v127
    %v319 = vunpack.c.h.b16 %v127
    %v320 = vunpack.c.l.b16 %v128
    %v321 = vunpack.c.h.b16 %v128
    %v322 = vunpack.c.l.b16 %v129
    %v323 = vunpack.c.h.b16 %v129
    %v324 = vunpack.c.l.b16 %v130
    %v325 = vunpack.c.h.b16 %v130
    %v326 = vunpack.c.l.b16 %v131
    %v327 = vunpack.c.h.b16 %v131
    %v328 = vunpack.c.l.b16 %v132
    %v329 = vunpack.c.h.b16 %v132
    %v330 = vunpack.c.l.b16 %v133
    %v331 = vunpack.c.h.b16 %v133
    %v332 = vunpack.c.l.b16 %v134
    %v333 = vunpack.c.h.b16 %v134
    %v334 = vunpack.c.l.b16 %v135
    %v335 = vunpack.c.h.b16 %v135
    %v336 = vunpack.c.l.b16 %v136
    %v337 = vunpack.c.h.b16 %v136
    %v338 = vunpack.c.l.b16 %v137
    %v339 = vunpack.c.h.b16 %v137
    %v340 = vunpack.c.l.b16 %v138
    %v341 = vunpack.c.h.b16 %v138
    %v342 = vunpack.c.l.b16 %v139
    %v343 = vunpack.c.h.b16 %v139
    %v344 = vunpack.c.l.b16 %v140
    %v345 = vunpack.c.h.b16 %v140
    %v346 = vunpack.c.l.b16 %v141
    %v347 = vunpack.c.h.b16 %v141
    %v348 = vunpack.c.l.b16 %v142
    %v349 = vunpack.c.h.b16 %v142
    %v350 = vunpack.c.l.b16 %v143
    %v351 = vunpack.c.h.b16 %v143
    %v352 = vunpack.c.l.b16 %v144
    %v353 = vunpack.c.h.b16 %v144
    %v354 = vunpack.c.l.b16 %v145
    %v355 = vunpack.c.h.b16 %v145
    %v356 = vunpack.c.l.b16 %v146
    %v357 = vunpack.c.h.b16 %v146
    %v358 = vunpack.c.l.b16 %v147
    %v359 = vunpack.c.h.b16 %v147
    %v360 = vunpack.c.l.b16 %v148
    %v361 = vunpack.c.h.b16 %v148
    %v362 = vunpack.c.l.b16 %v149
    %v363 = vunpack.c.h.b16 %v149
    %v364 = vunpack.c.l.b16 %v150
    %v365 = vunpack.c.h.b16 %v150
    %v366 = vunpack.c.l.b16 %v151
    %v367 = vunpack.c.h.b16 %v151
    %v368 = vunpack.c.l.b16 %v152
    %v369 = vunpack.c.h.b16 %v152
    %v370 = vunpack.c.l.b16 %v153
    %v371 = vunpack.c.h.b16 %v153
    %v372 = vunpack.c.l.b16 %v154
    %v373 = vunpack.c.h.b16 %v154
    %v374 = vunpack.c.l.b16 %v155
    %v375 = vunpack.c.h.b16 %v155
    %v376 = vunpack.c.l.b16 %v156
    %v377 = vunpack.c.h.b16 %v156
    %v378 = vpack.c.b16 %v254, %v250
    %v379 = vpack.c.b16 %v255, %v251
    %v380 = vpack.c.b16 %v256, %v252
    %v381 = vpack.c.b16 %v257, %v253
    %v382 = vpack.c.b16 %v262, %v258
    %v383 = vpack.c.b16 %v263, %v259
    %v384 = vpack.c.b16 %v264, %v260
    %v385 = vpack.c.b16 %v265, %v261
    %v386 = vpack.c.b16 %v270, %v266
    %v387 = vpack.c.b16 %v271, %v267
    %v388 = vpack.c.b16 %v272, %v268
    %v389 = vpack.c.b16 %v273, %v269
    %v390 = vpack.c.b16 %v278, %v274
    %v391 = vpack.c.b16 %v279, %v275
    %v392 = vpack.c.b16 %v280, %v276
    %v393 = vpack.c.b16 %v281, %v277
    %v394 = vpack.c.b16 %v286, %v282
    %v395 = vpack.c.b16 %v287, %v283
    %v396 = vpack.c.b16 %v288, %v284
    %v397 = vpack.c.b16 %v289, %v285
    %v398 = vpack.c.b16 %v294, %v290
    %v399 = vpack.c.b16 %v295, %v291
    %v400 = vpack.c.b16 %v296, %v292
    %v401 = vpack.c.b16 %v297, %v293
    %v402 = vpack.c.b16 %v302, %v298
    %v403 = vpack.c.b16 %v303, %v299
    %v404 = vpack.c.b16 %v304, %v300
    %v405 = vpack.c.b16 %v305, %v301
    %v406 = vpack.c.b16 %v310, %v306
    %v407 = vpack.c.b16 %v311, %v307
    %v408 = vpack.c.b16 %v312, %v308
    %v409 = vpack.c.b16 %v313, %v309
    %v410 = vpack.c.b16 %v318, %v314
    %v411 = vpack.c.b16 %v319, %v315
    %v412 = vpack.c.b16 %v320, %v316
    %v413 = vpack.c.b16 %v321, %v317
    %v414 = vpack.c.b16 %v326, %v322
    %v415 = vpack.c.b16 %v327, %v323
    %v416 = vpack.c.b16 %v328, %v324
    %v417 = vpack.c.b16 %v329, %v325
    %v418 = vpack.c.b16 %v334, %v330
    %v419 = vpack.c.b16 %v335, %v331
    %v420 = vpack.c.b16 %v336, %v332
    %v421 = vpack.c.b16 %v337, %v333
    %v422 = vpack.c.b16 %v342, %v338
    %v423 = vpack.c.b16 %v343, %v339
    %v424 = vpack.c.b16 %v344, %v340
    %v425 = vpack.c.b16 %v345, %v341
    %v426 = vpack.c.b16 %v350, %v346
    %v427 = vpack.c.b16 %v351, %v347
    %v428 = vpack.c.b16 %v352, %v348
    %v429 = vpack.c.b16 %v353, %v349
    %v430 = vpack.c.b16 %v358, %v354
    %v431 = vpack.c.b16 %v359, %v355
    %v432 = vpack.c.b16 %v360, %v356
    %v433 = vpack.c.b16 %v361, %v357
    %v434 = vpack.c.b16 %v366, %v362
    %v435 = vpack.c.b16 %v367, %v363
    %v436 = vpack.c.b16 %v368, %v364
    %v437 = vpack.c.b16 %v369, %v365
    %v438 = vpack.c.b16 %v374, %v370
    %v439 = vpack.c.b16 %v375, %v371
    %v440 = vpack.c.b16 %v376, %v372
    %v441 = vpack.c.b16 %v377, %v373
    %506 = vmatprep.subr.bf16.mxu0 %v407
    %507 = vmatpush1.bf16.msra.mxu0 %v406
    %508 = vmatprep.subr.bf16.mxu0 %v403
    %509 = vmatpush1.bf16.msra.mxu0 %v402
    %510 = vmatprep.subr.bf16.mxu0 %v399
    %511 = vmatpush1.bf16.msra.mxu0 %v398
    %512 = vmatprep.subr.bf16.mxu0 %v395
    %513 = vmatpush1.bf16.msra.mxu0 %v394
    %514 = vmatprep.subr.bf16.mxu0 %v391
    %515 = vmatpush1.bf16.msra.mxu0 %v390
    %516 = vmatprep.subr.bf16.mxu0 %v387
    %517 = vmatpush1.bf16.msra.mxu0 %v386
    %518 = vmatprep.subr.bf16.mxu0 %v383
    %519 = vmatpush1.bf16.msra.mxu0 %v382
    %520 = vmatprep.subr.bf16.mxu0 %v379
    %521 = vmatpush1.bf16.msra.mxu0 %v378
    %522 = vmatprep.subr.bf16.mxu0 %v439
    %523 = vmatpush2.bf16.msra.mxu0 %v438
    %524 = vmatprep.subr.bf16.mxu0 %v435
    %525 = vmatpush2.bf16.msra.mxu0 %v434
    %526 = vmatprep.subr.bf16.mxu0 %v431
    %527 = vmatpush2.bf16.msra.mxu0 %v430
    %528 = vmatprep.subr.bf16.mxu0 %v427
    %529 = vmatpush2.bf16.msra.mxu0 %v426
    %530 = vmatprep.subr.bf16.mxu0 %v423
    %531 = vmatpush2.bf16.msra.mxu0 %v422
    %532 = vmatprep.subr.bf16.mxu0 %v419
    %533 = vmatpush2.bf16.msra.mxu0 %v418
    %534 = vmatprep.subr.bf16.mxu0 %v415
    %535 = vmatpush2.bf16.msra.mxu0 %v414
    %536 = vmatprep.subr.bf16.mxu0 %v411
    %537 = vmatpush2.bf16.msra.mxu0 %v410
    %538 = vmatprep.mubr.bf16.mxu0 %v183
    %539 = vmatmul.mubr.bf16.gmra.mxu0 %v182
    %v540 = vpop.f32.mrf.mxu0
    %v541 = vadd.f32 %v162, %v540
    %v542 = vpop.f32.mrf.mxu0
    %v543 = vadd.f32 %v166, %v542
    %v544 = vpop.f32.mrf.mxu0
    %v545 = vpop.f32.mrf.mxu0
    %546 = vdwg.mxu0
    %547 = vmatprep.subr.bf16.mxu0 %v409
    %548 = vmatpush1.bf16.msra.mxu0 %v408
    %549 = vmatprep.subr.bf16.mxu0 %v405
    %550 = vmatpush1.bf16.msra.mxu0 %v404
    %551 = vmatprep.subr.bf16.mxu0 %v401
    %552 = vmatpush1.bf16.msra.mxu0 %v400
    %553 = vmatprep.subr.bf16.mxu0 %v397
    %554 = vmatpush1.bf16.msra.mxu0 %v396
    %555 = vmatprep.subr.bf16.mxu0 %v393
    %556 = vmatpush1.bf16.msra.mxu0 %v392
    %557 = vmatprep.subr.bf16.mxu0 %v389
    %558 = vmatpush1.bf16.msra.mxu0 %v388
    %559 = vmatprep.subr.bf16.mxu0 %v385
    %560 = vmatpush1.bf16.msra.mxu0 %v384
    %561 = vmatprep.subr.bf16.mxu0 %v381
    %562 = vmatpush1.bf16.msra.mxu0 %v380
    %563 = vmatprep.subr.bf16.mxu0 %v441
    %564 = vmatpush2.bf16.msra.mxu0 %v440
    %565 = vmatprep.subr.bf16.mxu0 %v437
    %566 = vmatpush2.bf16.msra.mxu0 %v436
    %567 = vmatprep.subr.bf16.mxu0 %v433
    %568 = vmatpush2.bf16.msra.mxu0 %v432
    %569 = vmatprep.subr.bf16.mxu0 %v429
    %570 = vmatpush2.bf16.msra.mxu0 %v428
    %571 = vmatprep.subr.bf16.mxu0 %v425
    %572 = vmatpush2.bf16.msra.mxu0 %v424
    %573 = vmatprep.subr.bf16.mxu0 %v421
    %574 = vmatpush2.bf16.msra.mxu0 %v420
    %575 = vmatprep.subr.bf16.mxu0 %v417
    %576 = vmatpush2.bf16.msra.mxu0 %v416
    %577 = vmatprep.subr.bf16.mxu0 %v413
    %578 = vmatpush2.bf16.msra.mxu0 %v412
    %579 = vmatprep.mubr.bf16.mxu0 %v183
    %580 = vmatmul.mubr.bf16.gmra.mxu0 %v182
    %v581 = vpop.f32.mrf.mxu0
    %v582 = vadd.f32 %v170, %v581
    %v583 = vpop.f32.mrf.mxu0
    %v584 = vadd.f32 %v174, %v583
    %v585 = vpop.f32.mrf.mxu0
    %v586 = vpop.f32.mrf.mxu0
    %587 = vdwg.mxu0
    %v588 = vmax.f32 %v541, 0.0
    %v589 = vmax.f32 %v543, 0.0
    %v590 = vmax.f32 %v582, 0.0
    %v591 = vmax.f32 %v584, 0.0
    %v592 = vpack.c.bf16 %v588, %v588
    %v593 = vpack.c.bf16 %v589, %v589
    %v594 = vpack.c.bf16 %v590, %v590
    %v595 = vpack.c.bf16 %v591, %v591
    %v596 = vld [vmem:[#allocation8] sm:$0xff]
    %v597 = vld [vmem:[#allocation8 + $0x8] sm:$0xff]
    %v598 = vld [vmem:[#allocation8 + $0x10] sm:$0xff]
    %v599 = vld [vmem:[#allocation8 + $0x18] sm:$0xff]
    %v600 = vld [vmem:[#allocation8 + $0x20] sm:$0xff]
    %v601 = vld [vmem:[#allocation8 + $0x28] sm:$0xff]
    %v602 = vld [vmem:[#allocation8 + $0x30] sm:$0xff]
    %v603 = vld [vmem:[#allocation8 + $0x38] sm:$0xff]
    %v604 = vld [vmem:[#allocation8 + $0x40] sm:$0xff]
    %v605 = vld [vmem:[#allocation8 + $0x48] sm:$0xff]
    %v606 = vld [vmem:[#allocation8 + $0x50] sm:$0xff]
    %v607 = vld [vmem:[#allocation8 + $0x58] sm:$0xff]
    %v608 = vld [vmem:[#allocation8 + $0x60] sm:$0xff]
    %v609 = vld [vmem:[#allocation8 + $0x68] sm:$0xff]
    %v610 = vld [vmem:[#allocation8 + $0x70] sm:$0xff]
    %v611 = vld [vmem:[#allocation8 + $0x78] sm:$0xff]
    %v612 = vld [vmem:[#allocation8 + $0x80] sm:$0xff]
    %v613 = vld [vmem:[#allocation8 + $0x88] sm:$0xff]
    %v614 = vld [vmem:[#allocation8 + $0x90] sm:$0xff]
    %v615 = vld [vmem:[#allocation8 + $0x98] sm:$0xff]
    %v616 = vld [vmem:[#allocation8 + $0xa0] sm:$0xff]
    %v617 = vld [vmem:[#allocation8 + $0xa8] sm:$0xff]
    %v618 = vld [vmem:[#allocation8 + $0xb0] sm:$0xff]
    %v619 = vld [vmem:[#allocation8 + $0xb8] sm:$0xff]
    %v620 = vld [vmem:[#allocation8 + $0xc0] sm:$0xff]
    %v621 = vld [vmem:[#allocation8 + $0xc8] sm:$0xff]
    %v622 = vld [vmem:[#allocation8 + $0xd0] sm:$0xff]
    %v623 = vld [vmem:[#allocation8 + $0xd8] sm:$0xff]
    %v624 = vld [vmem:[#allocation8 + $0xe0] sm:$0xff]
    %v625 = vld [vmem:[#allocation8 + $0xe8] sm:$0xff]
    %v626 = vld [vmem:[#allocation8 + $0xf0] sm:$0xff]
    %v627 = vld [vmem:[#allocation8 + $0xf8] sm:$0xff]
    %v628 = vld [vmem:[#allocation8 + $0x100] sm:$0xff]
    %v629 = vld [vmem:[#allocation8 + $0x108] sm:$0xff]
    %v630 = vld [vmem:[#allocation8 + $0x110] sm:$0xff]
    %v631 = vld [vmem:[#allocation8 + $0x118] sm:$0xff]
    %v632 = vld [vmem:[#allocation8 + $0x120] sm:$0xff]
    %v633 = vld [vmem:[#allocation8 + $0x128] sm:$0xff]
    %v634 = vld [vmem:[#allocation8 + $0x130] sm:$0xff]
    %v635 = vld [vmem:[#allocation8 + $0x138] sm:$0xff]
    %v636 = vld [vmem:[#allocation8 + $0x140] sm:$0xff]
    %v637 = vld [vmem:[#allocation8 + $0x148] sm:$0xff]
    %v638 = vld [vmem:[#allocation8 + $0x150] sm:$0xff]
    %v639 = vld [vmem:[#allocation8 + $0x158] sm:$0xff]
    %v640 = vld [vmem:[#allocation8 + $0x160] sm:$0xff]
    %v641 = vld [vmem:[#allocation8 + $0x168] sm:$0xff]
    %v642 = vld [vmem:[#allocation8 + $0x170] sm:$0xff]
    %v643 = vld [vmem:[#allocation8 + $0x178] sm:$0xff]
    %v644 = vld [vmem:[#allocation8 + $0x180] sm:$0xff]
    %v645 = vld [vmem:[#allocation8 + $0x188] sm:$0xff]
    %v646 = vld [vmem:[#allocation8 + $0x190] sm:$0xff]
    %v647 = vld [vmem:[#allocation8 + $0x198] sm:$0xff]
    %v648 = vld [vmem:[#allocation8 + $0x1a0] sm:$0xff]
    %v649 = vld [vmem:[#allocation8 + $0x1a8] sm:$0xff]
    %v650 = vld [vmem:[#allocation8 + $0x1b0] sm:$0xff]
    %v651 = vld [vmem:[#allocation8 + $0x1b8] sm:$0xff]
    %v652 = vld [vmem:[#allocation8 + $0x1c0] sm:$0xff]
    %v653 = vld [vmem:[#allocation8 + $0x1c8] sm:$0xff]
    %v654 = vld [vmem:[#allocation8 + $0x1d0] sm:$0xff]
    %v655 = vld [vmem:[#allocation8 + $0x1d8] sm:$0xff]
    %v656 = vld [vmem:[#allocation8 + $0x1e0] sm:$0xff]
    %v657 = vld [vmem:[#allocation8 + $0x1e8] sm:$0xff]
    %v658 = vld [vmem:[#allocation8 + $0x1f0] sm:$0xff]
    %v659 = vld [vmem:[#allocation8 + $0x1f8] sm:$0xff]
    %v660 = vld [vmem:[%s4] sm:$0x3]
    %v662 = vlaneseq
    %v663 = vshrl.u32 %v662, 7
    %v664 = vsub.s32 0, %v663
    %v665 = vrot.slane %v660, %v664
    %v666 = vlaneseq
    %v667 = vshrl.u32 %v666, 7
    %v668 = vsub.s32 1, %v667
    %v669 = vrot.slane %v660, %v668
    %v736 = vunpack.c.l.b16 %v596
    %v737 = vunpack.c.h.b16 %v596
    %v738 = vunpack.c.l.b16 %v597
    %v739 = vunpack.c.h.b16 %v597
    %v740 = vunpack.c.l.b16 %v598
    %v741 = vunpack.c.h.b16 %v598
    %v742 = vunpack.c.l.b16 %v599
    %v743 = vunpack.c.h.b16 %v599
    %v744 = vunpack.c.l.b16 %v600
    %v745 = vunpack.c.h.b16 %v600
    %v746 = vunpack.c.l.b16 %v601
    %v747 = vunpack.c.h.b16 %v601
    %v748 = vunpack.c.l.b16 %v602
    %v749 = vunpack.c.h.b16 %v602
    %v750 = vunpack.c.l.b16 %v603
    %v751 = vunpack.c.h.b16 %v603
    %v752 = vunpack.c.l.b16 %v604
    %v753 = vunpack.c.h.b16 %v604
    %v754 = vunpack.c.l.b16 %v605
    %v755 = vunpack.c.h.b16 %v605
    %v756 = vunpack.c.l.b16 %v606
    %v757 = vunpack.c.h.b16 %v606
    %v758 = vunpack.c.l.b16 %v607
    %v759 = vunpack.c.h.b16 %v607
    %v760 = vunpack.c.l.b16 %v608
    %v761 = vunpack.c.h.b16 %v608
    %v762 = vunpack.c.l.b16 %v609
    %v763 = vunpack.c.h.b16 %v609
    %v764 = vunpack.c.l.b16 %v610
    %v765 = vunpack.c.h.b16 %v610
    %v766 = vunpack.c.l.b16 %v611
    %v767 = vunpack.c.h.b16 %v611
    %v768 = vunpack.c.l.b16 %v612
    %v769 = vunpack.c.h.b16 %v612
    %v770 = vunpack.c.l.b16 %v613
    %v771 = vunpack.c.h.b16 %v613
    %v772 = vunpack.c.l.b16 %v614
    %v773 = vunpack.c.h.b16 %v614
    %v774 = vunpack.c.l.b16 %v615
    %v775 = vunpack.c.h.b16 %v615
    %v776 = vunpack.c.l.b16 %v616
    %v777 = vunpack.c.h.b16 %v616
    %v778 = vunpack.c.l.b16 %v617
    %v779 = vunpack.c.h.b16 %v617
    %v780 = vunpack.c.l.b16 %v618
    %v781 = vunpack.c.h.b16 %v618
    %v782 = vunpack.c.l.b16 %v619
    %v783 = vunpack.c.h.b16 %v619
    %v784 = vunpack.c.l.b16 %v620
    %v785 = vunpack.c.h.b16 %v620
    %v786 = vunpack.c.l.b16 %v621
    %v787 = vunpack.c.h.b16 %v621
    %v788 = vunpack.c.l.b16 %v622
    %v789 = vunpack.c.h.b16 %v622
    %v790 = vunpack.c.l.b16 %v623
    %v791 = vunpack.c.h.b16 %v623
    %v792 = vunpack.c.l.b16 %v624
    %v793 = vunpack.c.h.b16 %v624
    %v794 = vunpack.c.l.b16 %v625
    %v795 = vunpack.c.h.b16 %v625
    %v796 = vunpack.c.l.b16 %v626
    %v797 = vunpack.c.h.b16 %v626
    %v798 = vunpack.c.l.b16 %v627
    %v799 = vunpack.c.h.b16 %v627
    %v800 = vunpack.c.l.b16 %v628
    %v801 = vunpack.c.h.b16 %v628
    %v802 = vunpack.c.l.b16 %v629
    %v803 = vunpack.c.h.b16 %v629
    %v804 = vunpack.c.l.b16 %v630
    %v805 = vunpack.c.h.b16 %v630
    %v806 = vunpack.c.l.b16 %v631
    %v807 = vunpack.c.h.b16 %v631
    %v808 = vunpack.c.l.b16 %v632
    %v809 = vunpack.c.h.b16 %v632
    %v810 = vunpack.c.l.b16 %v633
    %v811 = vunpack.c.h.b16 %v633
    %v812 = vunpack.c.l.b16 %v634
    %v813 = vunpack.c.h.b16 %v634
    %v814 = vunpack.c.l.b16 %v635
    %v815 = vunpack.c.h.b16 %v635
    %v816 = vunpack.c.l.b16 %v636
    %v817 = vunpack.c.h.b16 %v636
    %v818 = vunpack.c.l.b16 %v637
    %v819 = vunpack.c.h.b16 %v637
    %v820 = vunpack.c.l.b16 %v638
    %v821 = vunpack.c.h.b16 %v638
    %v822 = vunpack.c.l.b16 %v639
    %v823 = vunpack.c.h.b16 %v639
    %v824 = vunpack.c.l.b16 %v640
    %v825 = vunpack.c.h.b16 %v640
    %v826 = vunpack.c.l.b16 %v641
    %v827 = vunpack.c.h.b16 %v641
    %v828 = vunpack.c.l.b16 %v642
    %v829 = vunpack.c.h.b16 %v642
    %v830 = vunpack.c.l.b16 %v643
    %v831 = vunpack.c.h.b16 %v643
    %v832 = vunpack.c.l.b16 %v644
    %v833 = vunpack.c.h.b16 %v644
    %v834 = vunpack.c.l.b16 %v645
    %v835 = vunpack.c.h.b16 %v645
    %v836 = vunpack.c.l.b16 %v646
    %v837 = vunpack.c.h.b16 %v646
    %v838 = vunpack.c.l.b16 %v647
    %v839 = vunpack.c.h.b16 %v647
    %v840 = vunpack.c.l.b16 %v648
    %v841 = vunpack.c.h.b16 %v648
    %v842 = vunpack.c.l.b16 %v649
    %v843 = vunpack.c.h.b16 %v649
    %v844 = vunpack.c.l.b16 %v650
    %v845 = vunpack.c.h.b16 %v650
    %v846 = vunpack.c.l.b16 %v651
    %v847 = vunpack.c.h.b16 %v651
    %v848 = vunpack.c.l.b16 %v652
    %v849 = vunpack.c.h.b16 %v652
    %v850 = vunpack.c.l.b16 %v653
    %v851 = vunpack.c.h.b16 %v653
    %v852 = vunpack.c.l.b16 %v654
    %v853 = vunpack.c.h.b16 %v654
    %v854 = vunpack.c.l.b16 %v655
    %v855 = vunpack.c.h.b16 %v655
    %v856 = vunpack.c.l.b16 %v656
    %v857 = vunpack.c.h.b16 %v656
    %v858 = vunpack.c.l.b16 %v657
    %v859 = vunpack.c.h.b16 %v657
    %v860 = vunpack.c.l.b16 %v658
    %v861 = vunpack.c.h.b16 %v658
    %v862 = vunpack.c.l.b16 %v659
    %v863 = vunpack.c.h.b16 %v659
    %v864 = vpack.c.b16 %v738, %v736
    %v865 = vpack.c.b16 %v739, %v737
    %v866 = vpack.c.b16 %v742, %v740
    %v867 = vpack.c.b16 %v743, %v741
    %v868 = vpack.c.b16 %v746, %v744
    %v869 = vpack.c.b16 %v747, %v745
    %v870 = vpack.c.b16 %v750, %v748
    %v871 = vpack.c.b16 %v751, %v749
    %v872 = vpack.c.b16 %v754, %v752
    %v873 = vpack.c.b16 %v755, %v753
    %v874 = vpack.c.b16 %v758, %v756
    %v875 = vpack.c.b16 %v759, %v757
    %v876 = vpack.c.b16 %v762, %v760
    %v877 = vpack.c.b16 %v763, %v761
    %v878 = vpack.c.b16 %v766, %v764
    %v879 = vpack.c.b16 %v767, %v765
    %v880 = vpack.c.b16 %v770, %v768
    %v881 = vpack.c.b16 %v771, %v769
    %v882 = vpack.c.b16 %v774, %v772
    %v883 = vpack.c.b16 %v775, %v773
    %v884 = vpack.c.b16 %v778, %v776
    %v885 = vpack.c.b16 %v779, %v777
    %v886 = vpack.c.b16 %v782, %v780
    %v887 = vpack.c.b16 %v783, %v781
    %v888 = vpack.c.b16 %v786, %v784
    %v889 = vpack.c.b16 %v787, %v785
    %v890 = vpack.c.b16 %v790, %v788
    %v891 = vpack.c.b16 %v791, %v789
    %v892 = vpack.c.b16 %v794, %v792
    %v893 = vpack.c.b16 %v795, %v793
    %v894 = vpack.c.b16 %v798, %v796
    %v895 = vpack.c.b16 %v799, %v797
    %v896 = vpack.c.b16 %v802, %v800
    %v897 = vpack.c.b16 %v803, %v801
    %v898 = vpack.c.b16 %v806, %v804
    %v899 = vpack.c.b16 %v807, %v805
    %v900 = vpack.c.b16 %v810, %v808
    %v901 = vpack.c.b16 %v811, %v809
    %v902 = vpack.c.b16 %v814, %v812
    %v903 = vpack.c.b16 %v815, %v813
    %v904 = vpack.c.b16 %v818, %v816
    %v905 = vpack.c.b16 %v819, %v817
    %v906 = vpack.c.b16 %v822, %v820
    %v907 = vpack.c.b16 %v823, %v821
    %v908 = vpack.c.b16 %v826, %v824
    %v909 = vpack.c.b16 %v827, %v825
    %v910 = vpack.c.b16 %v830, %v828
    %v911 = vpack.c.b16 %v831, %v829
    %v912 = vpack.c.b16 %v834, %v832
    %v913 = vpack.c.b16 %v835, %v833
    %v914 = vpack.c.b16 %v838, %v836
    %v915 = vpack.c.b16 %v839, %v837
    %v916 = vpack.c.b16 %v842, %v840
    %v917 = vpack.c.b16 %v843, %v841
    %v918 = vpack.c.b16 %v846, %v844
    %v919 = vpack.c.b16 %v847, %v845
    %v920 = vpack.c.b16 %v850, %v848
    %v921 = vpack.c.b16 %v851, %v849
    %v922 = vpack.c.b16 %v854, %v852
    %v923 = vpack.c.b16 %v855, %v853
    %v924 = vpack.c.b16 %v858, %v856
    %v925 = vpack.c.b16 %v859, %v857
    %v926 = vpack.c.b16 %v862, %v860
    %v927 = vpack.c.b16 %v863, %v861
    %992 = vmatprep.subr.bf16.mxu0 %v879
    %993 = vmatpush1.bf16.msra.mxu0 %v878
    %994 = vmatprep.subr.bf16.mxu0 %v877
    %995 = vmatpush1.bf16.msra.mxu0 %v876
    %996 = vmatprep.subr.bf16.mxu0 %v875
    %997 = vmatpush1.bf16.msra.mxu0 %v874
    %998 = vmatprep.subr.bf16.mxu0 %v873
    %999 = vmatpush1.bf16.msra.mxu0 %v872
    %1000 = vmatprep.subr.bf16.mxu0 %v871
    %1001 = vmatpush1.bf16.msra.mxu0 %v870
    %1002 = vmatprep.subr.bf16.mxu0 %v869
    %1003 = vmatpush1.bf16.msra.mxu0 %v868
    %1004 = vmatprep.subr.bf16.mxu0 %v867
    %1005 = vmatpush1.bf16.msra.mxu0 %v866
    %1006 = vmatprep.subr.bf16.mxu0 %v865
    %1007 = vmatpush1.bf16.msra.mxu0 %v864
    %1008 = vmatprep.subr.bf16.mxu0 %v895
    %1009 = vmatpush2.bf16.msra.mxu0 %v894
    %1010 = vmatprep.subr.bf16.mxu0 %v893
    %1011 = vmatpush2.bf16.msra.mxu0 %v892
    %1012 = vmatprep.subr.bf16.mxu0 %v891
    %1013 = vmatpush2.bf16.msra.mxu0 %v890
    %1014 = vmatprep.subr.bf16.mxu0 %v889
    %1015 = vmatpush2.bf16.msra.mxu0 %v888
    %1016 = vmatprep.subr.bf16.mxu0 %v887
    %1017 = vmatpush2.bf16.msra.mxu0 %v886
    %1018 = vmatprep.subr.bf16.mxu0 %v885
    %1019 = vmatpush2.bf16.msra.mxu0 %v884
    %1020 = vmatprep.subr.bf16.mxu0 %v883
    %1021 = vmatpush2.bf16.msra.mxu0 %v882
    %1022 = vmatprep.subr.bf16.mxu0 %v881
    %1023 = vmatpush2.bf16.msra.mxu0 %v880
    %1024 = vmatprep.mubr.bf16.mxu0 %v593
    %1025 = vmatmul.mubr.bf16.gmra.mxu0 %v592
    %v1026 = vpop.f32.mrf.mxu0
    %v1027 = vadd.f32 %v665, %v1026
    %v1028 = vpop.f32.mrf.mxu0
    %v1029 = vadd.f32 %v669, %v1028
    %v1030 = vpop.f32.mrf.mxu0
    %v1031 = vpop.f32.mrf.mxu0
    %1032 = vdwg.mxu0
    %1033 = vmatprep.subr.bf16.mxu0 %v911
    %1034 = vmatpush1.bf16.msra.mxu0 %v910
    %1035 = vmatprep.subr.bf16.mxu0 %v909
    %1036 = vmatpush1.bf16.msra.mxu0 %v908
    %1037 = vmatprep.subr.bf16.mxu0 %v907
    %1038 = vmatpush1.bf16.msra.mxu0 %v906
    %1039 = vmatprep.subr.bf16.mxu0 %v905
    %1040 = vmatpush1.bf16.msra.mxu0 %v904
    %1041 = vmatprep.subr.bf16.mxu0 %v903
    %1042 = vmatpush1.bf16.msra.mxu0 %v902
    %1043 = vmatprep.subr.bf16.mxu0 %v901
    %1044 = vmatpush1.bf16.msra.mxu0 %v900
    %1045 = vmatprep.subr.bf16.mxu0 %v899
    %1046 = vmatpush1.bf16.msra.mxu0 %v898
    %1047 = vmatprep.subr.bf16.mxu0 %v897
    %1048 = vmatpush1.bf16.msra.mxu0 %v896
    %1049 = vmatprep.subr.bf16.mxu0 %v927
    %1050 = vmatpush2.bf16.msra.mxu0 %v926
    %1051 = vmatprep.subr.bf16.mxu0 %v925
    %1052 = vmatpush2.bf16.msra.mxu0 %v924
    %1053 = vmatprep.subr.bf16.mxu0 %v923
    %1054 = vmatpush2.bf16.msra.mxu0 %v922
    %1055 = vmatprep.subr.bf16.mxu0 %v921
    %1056 = vmatpush2.bf16.msra.mxu0 %v920
    %1057 = vmatprep.subr.bf16.mxu0 %v919
    %1058 = vmatpush2.bf16.msra.mxu0 %v918
    %1059 = vmatprep.subr.bf16.mxu0 %v917
    %1060 = vmatpush2.bf16.msra.mxu0 %v916
    %1061 = vmatprep.subr.bf16.mxu0 %v915
    %1062 = vmatpush2.bf16.msra.mxu0 %v914
    %1063 = vmatprep.subr.bf16.mxu0 %v913
    %1064 = vmatpush2.bf16.msra.mxu0 %v912
    %1065 = vmatprep.mubr.bf16.mxu0 %v595
    %1066 = vmatmul.mubr.bf16.gmra.mxu0 %v594
    %v1067 = vpop.f32.mrf.mxu0
    %v1068 = vadd.f32 %v1027, %v1067
    %v1069 = vpop.f32.mrf.mxu0
    %v1070 = vadd.f32 %v1029, %v1069
    %v1071 = vpop.f32.mrf.mxu0
    %v1072 = vpop.f32.mrf.mxu0
    %1073 = vdwg.mxu0
    %v1074 = vmax.f32 %v1068, 0.0
    %v1075 = vmax.f32 %v1070, 0.0
    %v1076 = vpack.c.bf16 %v1074, %v1074
    %v1077 = vpack.c.bf16 %v1075, %v1075
    %v1078 = vld [vmem:[#allocation10] sm:$0xf]
    %v1079 = vld [vmem:[#allocation10 + $0x4] sm:$0xf]
    %v1080 = vld [vmem:[#allocation10 + $0x8] sm:$0xf]
    %v1081 = vld [vmem:[#allocation10 + $0xc] sm:$0xf]
    %v1082 = vld [vmem:[#allocation10 + $0x10] sm:$0xf]
    %v1083 = vld [vmem:[#allocation10 + $0x14] sm:$0xf]
    %v1084 = vld [vmem:[#allocation10 + $0x18] sm:$0xf]
    %v1085 = vld [vmem:[#allocation10 + $0x1c] sm:$0xf]
    %v1086 = vld [vmem:[#allocation10 + $0x20] sm:$0xf]
    %v1087 = vld [vmem:[#allocation10 + $0x24] sm:$0xf]
    %v1088 = vld [vmem:[#allocation10 + $0x28] sm:$0xf]
    %v1089 = vld [vmem:[#allocation10 + $0x2c] sm:$0xf]
    %v1090 = vld [vmem:[#allocation10 + $0x30] sm:$0xf]
    %v1091 = vld [vmem:[#allocation10 + $0x34] sm:$0xf]
    %v1092 = vld [vmem:[#allocation10 + $0x38] sm:$0xf]
    %v1093 = vld [vmem:[#allocation10 + $0x3c] sm:$0xf]
    %v1094 = vld [vmem:[#allocation10 + $0x40] sm:$0xf]
    %v1095 = vld [vmem:[#allocation10 + $0x44] sm:$0xf]
    %v1096 = vld [vmem:[#allocation10 + $0x48] sm:$0xf]
    %v1097 = vld [vmem:[#allocation10 + $0x4c] sm:$0xf]
    %v1098 = vld [vmem:[#allocation10 + $0x50] sm:$0xf]
    %v1099 = vld [vmem:[#allocation10 + $0x54] sm:$0xf]
    %v1100 = vld [vmem:[#allocation10 + $0x58] sm:$0xf]
    %v1101 = vld [vmem:[#allocation10 + $0x5c] sm:$0xf]
    %v1102 = vld [vmem:[#allocation10 + $0x60] sm:$0xf]
    %v1103 = vld [vmem:[#allocation10 + $0x64] sm:$0xf]
    %v1104 = vld [vmem:[#allocation10 + $0x68] sm:$0xf]
    %v1105 = vld [vmem:[#allocation10 + $0x6c] sm:$0xf]
    %v1106 = vld [vmem:[#allocation10 + $0x70] sm:$0xf]
    %v1107 = vld [vmem:[#allocation10 + $0x74] sm:$0xf]
    %v1108 = vld [vmem:[#allocation10 + $0x78] sm:$0xf]
    %v1109 = vld [vmem:[#allocation10 + $0x7c] sm:$0xf]
    %v1110 = vld [vmem:[%s6] sm:$0x1]
    %v1112 = vlaneseq
    %v1113 = vshrl.u32 %v1112, 7
    %v1114 = vsub.s32 0, %v1113
    %v1115 = vrot.slane %v1110, %v1114
    %v1149 = vunpack.c.l.b16 %v1078
    %v1150 = vunpack.c.l.b16 %v1079
    %v1151 = vunpack.c.l.b16 %v1080
    %v1152 = vunpack.c.l.b16 %v1081
    %v1153 = vunpack.c.l.b16 %v1082
    %v1154 = vunpack.c.l.b16 %v1083
    %v1155 = vunpack.c.l.b16 %v1084
    %v1156 = vunpack.c.l.b16 %v1085
    %v1157 = vunpack.c.l.b16 %v1086
    %v1158 = vunpack.c.l.b16 %v1087
    %v1159 = vunpack.c.l.b16 %v1088
    %v1160 = vunpack.c.l.b16 %v1089
    %v1161 = vunpack.c.l.b16 %v1090
    %v1162 = vunpack.c.l.b16 %v1091
    %v1163 = vunpack.c.l.b16 %v1092
    %v1164 = vunpack.c.l.b16 %v1093
    %v1165 = vunpack.c.l.b16 %v1094
    %v1166 = vunpack.c.l.b16 %v1095
    %v1167 = vunpack.c.l.b16 %v1096
    %v1168 = vunpack.c.l.b16 %v1097
    %v1169 = vunpack.c.l.b16 %v1098
    %v1170 = vunpack.c.l.b16 %v1099
    %v1171 = vunpack.c.l.b16 %v1100
    %v1172 = vunpack.c.l.b16 %v1101
    %v1173 = vunpack.c.l.b16 %v1102
    %v1174 = vunpack.c.l.b16 %v1103
    %v1175 = vunpack.c.l.b16 %v1104
    %v1176 = vunpack.c.l.b16 %v1105
    %v1177 = vunpack.c.l.b16 %v1106
    %v1178 = vunpack.c.l.b16 %v1107
    %v1179 = vunpack.c.l.b16 %v1108
    %v1180 = vunpack.c.l.b16 %v1109
    %v1181 = vpack.c.b16 %v1150, %v1149
    %v1182 = vpack.c.b16 %v1152, %v1151
    %v1183 = vpack.c.b16 %v1154, %v1153
    %v1184 = vpack.c.b16 %v1156, %v1155
    %v1185 = vpack.c.b16 %v1158, %v1157
    %v1186 = vpack.c.b16 %v1160, %v1159
    %v1187 = vpack.c.b16 %v1162, %v1161
    %v1188 = vpack.c.b16 %v1164, %v1163
    %v1189 = vpack.c.b16 %v1166, %v1165
    %v1190 = vpack.c.b16 %v1168, %v1167
    %v1191 = vpack.c.b16 %v1170, %v1169
    %v1192 = vpack.c.b16 %v1172, %v1171
    %v1193 = vpack.c.b16 %v1174, %v1173
    %v1194 = vpack.c.b16 %v1176, %v1175
    %v1195 = vpack.c.b16 %v1178, %v1177
    %v1196 = vpack.c.b16 %v1180, %v1179
    %1213 = vmatprep.subr.bf16.mxu0 0
    %1214 = vmatpush1.bf16.msra.mxu0 %v1188
    %1215 = vmatprep.subr.bf16.mxu0 0
    %1216 = vmatpush1.bf16.msra.mxu0 %v1187
    %1217 = vmatprep.subr.bf16.mxu0 0
    %1218 = vmatpush1.bf16.msra.mxu0 %v1186
    %1219 = vmatprep.subr.bf16.mxu0 0
    %1220 = vmatpush1.bf16.msra.mxu0 %v1185
    %1221 = vmatprep.subr.bf16.mxu0 0
    %1222 = vmatpush1.bf16.msra.mxu0 %v1184
    %1223 = vmatprep.subr.bf16.mxu0 0
    %1224 = vmatpush1.bf16.msra.mxu0 %v1183
    %1225 = vmatprep.subr.bf16.mxu0 0
    %1226 = vmatpush1.bf16.msra.mxu0 %v1182
    %1227 = vmatprep.subr.bf16.mxu0 0
    %1228 = vmatpush1.bf16.msra.mxu0 %v1181
    %1229 = vmatprep.subr.bf16.mxu0 0
    %1230 = vmatpush2.bf16.msra.mxu0 %v1196
    %1231 = vmatprep.subr.bf16.mxu0 0
    %1232 = vmatpush2.bf16.msra.mxu0 %v1195
    %1233 = vmatprep.subr.bf16.mxu0 0
    %1234 = vmatpush2.bf16.msra.mxu0 %v1194
    %1235 = vmatprep.subr.bf16.mxu0 0
    %1236 = vmatpush2.bf16.msra.mxu0 %v1193
    %1237 = vmatprep.subr.bf16.mxu0 0
    %1238 = vmatpush2.bf16.msra.mxu0 %v1192
    %1239 = vmatprep.subr.bf16.mxu0 0
    %1240 = vmatpush2.bf16.msra.mxu0 %v1191
    %1241 = vmatprep.subr.bf16.mxu0 0
    %1242 = vmatpush2.bf16.msra.mxu0 %v1190
    %1243 = vmatprep.subr.bf16.mxu0 0
    %1244 = vmatpush2.bf16.msra.mxu0 %v1189
    %1245 = vmatprep.mubr.bf16.mxu0 %v1077
    %1246 = vmatmul.mubr.bf16.gmra.mxu0 %v1076
    %v1247 = vpop.f32.mrf.mxu0
    %v1248 = vadd.f32 %v1115, %v1247
    %v1249 = vpop.f32.mrf.mxu0
    %v1250 = vpop.f32.mrf.mxu0
    %v1251 = vpop.f32.mrf.mxu0
    %1252 = vdwg.mxu0
    %1253 = vmax.xlane.f32.xlu0 %v1248
    %v1254 = vpop.xlane.xlu0 %1253
    %v1255 = vsub.f32 %v1248, %v1254
    %v1256 = vmul.f32 %v1255, 1.442695
    %v1257 = vpow.pop %v1256
    %1258 = vadd.xlane.f32.xlu0 %v1257
    %v1259 = vpop.xlane.xlu0 %1258
    %v1260 = vrcp.pop %v1259
    %v1261 = vmul.f32 %v1257, %v1260
    %1262 = vst [vmem:[#allocation11] sm:$0xff] %v1261
    // Predicated region
    $region50: #{tpu_custom_call.1} parent=1 // pred_check
      _
    $region51: #{tpu_custom_call.1} parent=1 // pred_check_branch
      %1264 = sbr.rel (0) target = $region53
    $region52: #{tpu_custom_call.1} parent=1 // pred_region
      %s1266 = ssub.s32 128, 128
      %1267 = vsyncadd [#allocation4], %s1266
      %s1269 = sshll.u32 [#allocation11], 4
      %s1270 = int_to_ptr.vmem [resolvable:$true] %s1269
      %1272 = dma.vmem_to_hbm [thread:$0]  %s1270, 128, %s7, [#allocation4]
    $region53: #{tpu_custom_call.1} parent=1 // pred_fallthru
      _
    // Predicated region
    $region54: #{tpu_custom_call.1} parent=1 // pred_check
      _
    $region55: #{tpu_custom_call.1} parent=1 // pred_check_branch
      %1274 = sbr.rel (0) target = $region57
    $region56: #{tpu_custom_call.1} parent=1 // pred_region
      %1275 = dma.done [#allocation4], 128
    $region57: #{tpu_custom_call.1} parent=1 // pred_fallthru
      _
    %1276 = vsyncpa [#allocation3], 1
    %1277 = vsyncpa [#allocation6], 1
    %1278 = vsyncpa [#allocation9], 1
    %1279 = vsyncpa [#allocation4], 1

</llo_original>
